<compile_context>
chip_gen: v5e
topology: v5e:2x2
jax: 0.10.0
libtpu: 0.0.40
codegen_flags: <defaults>
</compile_context>

<pallas_src>
import jax
import jax.numpy as jnp
from jax.experimental import pallas as pl
from jax.experimental.pallas import tpu as pltpu


# Conv hyper-parameters of the motivator (fixed by the architecture).
_K1, _S1, _P1 = 8, 4, 2      # conv1: kernel 8, stride 4, pad 2
_K2, _P2 = 3, 1              # conv2: kernel 3, stride 1, pad 1


def _elu(y):
    # torch.nn.ELU(alpha=1.0); math kept in f32 (EUP exp + VPU select).
    return jnp.where(y > 0.0, y, jnp.exp(y) - 1.0)


# --------------------------- fused Pallas kernel -----------------------------

def _dop_fused_kernel(xt_ref, w1_ref, b1_ref, w2_ref, b2_ref, w3_ref, b3_ref,
                      o_ref):
    """Whole motivator forward for one batch tile, batch in the lane dimension.

    xt_ref : (F0p, bb)  bf16   [state flattened c*W+w ; action] per column
    w1_ref : (R,  F0p)  bf16   conv1 packed (window structure + action pre-sum)
    b1_ref : (R,  1)    f32
    w2_ref : (R,  R)    bf16   conv2 packed block-banded matrix
    b2_ref : (R,  1)    f32
    w3_ref : (code, R)  bf16   fc weight, flatten-permutation folded in
    b3_ref : (code, 1)  f32
    o_ref  : (code, bb) f32    (lane-dense, unmasked stores)

    R = wo1 * K, row index = width_position * K + filter.
    """
    h1 = jnp.dot(w1_ref[...], xt_ref[...], preferred_element_type=jnp.float32)
    h1 = _elu(h1 + b1_ref[...]).astype(jnp.bfloat16)
    h2 = jnp.dot(w2_ref[...], h1, preferred_element_type=jnp.float32)
    h2 = _elu(h2 + b2_ref[...]).astype(jnp.bfloat16)
    o_ref[...] = (jnp.dot(w3_ref[...], h2, preferred_element_type=jnp.float32)
                  + b3_ref[...]).astype(o_ref.dtype)


# ------------------------------ params / packing ------------------------------

def init_torch_params(key, state_channels, action_dim, kernels_count, width,
                      code_dim):
    """Deterministic synthetic weights in the PyTorch layouts."""
    cin = state_channels + action_dim
    wo1 = (width + 2 * _P1 - _K1) // _S1 + 1
    ks = jax.random.split(key, 6)
    return {
        "conv1_w": jax.random.normal(ks[0], (kernels_count, cin, _K1),
                                     jnp.float32) / jnp.sqrt(cin * _K1),
        "conv1_b": 0.1 * jax.random.normal(ks[1], (kernels_count,), jnp.float32),
        "conv2_w": jax.random.normal(ks[2], (kernels_count, kernels_count, _K2),
                                     jnp.float32) / jnp.sqrt(kernels_count * _K2),
        "conv2_b": 0.1 * jax.random.normal(ks[3], (kernels_count,), jnp.float32),
        "fc_w": jax.random.normal(ks[4], (code_dim, kernels_count * wo1),
                                  jnp.float32) / jnp.sqrt(kernels_count * wo1),
        "fc_b": 0.1 * jax.random.normal(ks[5], (code_dim,), jnp.float32),
    }


def pack_params(tp, state_channels, width):
    """Pack torch-layout weights into the kernel's fused matmul layouts (bf16).

    Done once at init; nothing is reshaped/cast per call.
    """
    K, cin, _ = tp["conv1_w"].shape
    C, W = state_channels, width
    A = cin - C
    code_dim = tp["fc_w"].shape[0]
    assert (W + 2 * _P1 - _K1) % _S1 == 0, "architecture requires W % 4 == 0"
    wo1 = (W + 2 * _P1 - _K1) // _S1 + 1
    assert tp["fc_w"].shape[1] == K * wo1

    # --- conv1, state part:  W1S[o*K+f, c*W+w] = w1[f, c, w + P1 - S1*o] -----
    o = jnp.arange(wo1)[:, None]
    wpos = jnp.arange(W)[None, :]
    t = wpos + _P1 - _S1 * o                                   # tap index (wo1, W)
    valid = (t >= 0) & (t < _K1)
    tc = jnp.where(valid, t, 0)
    g = jnp.transpose(tp["conv1_w"][:, :C, :], (2, 0, 1))[tc]  # (wo1, W, K, C)
    g = jnp.where(valid[:, :, None, None], g, 0.0)
    w1s = jnp.transpose(g, (0, 2, 3, 1)).reshape(wo1 * K, C * W)

    # --- conv1, action part: action is width-broadcast, so pre-sum the taps
    #     that land on real (non-pad) width positions for each output o. -------
    tap = jnp.arange(_K1)[None, :]
    w_of_tap = _S1 * o + tap - _P1                             # (wo1, K1)
    tap_valid = ((w_of_tap >= 0) & (w_of_tap < W)).astype(jnp.float32)
    w1a = jnp.einsum("ot,fat->ofa", tap_valid,
                     tp["conv1_w"][:, C:, :]).reshape(wo1 * K, A)

    w1 = jnp.concatenate([w1s, w1a], axis=1)                   # (R, C*W + A)
    # pad the contraction dim to a multiple of 8 (tile-friendly, zero cost)
    F0 = w1.shape[1]
    F0p = ((F0 + 7) // 8) * 8
    w1 = jnp.pad(w1, ((0, 0), (0, F0p - F0)))

    # --- conv2 as a block-banded (R, R) matrix:
    #     W2B[w*K+f, o*K+c] = w2[f, c, o - w + 1]  for o in {w-1, w, w+1}. -----
    wq = jnp.arange(wo1)[:, None]
    op = jnp.arange(wo1)[None, :]
    kk = op - wq + _P2
    v2 = (kk >= 0) & (kk < _K2)
    kkc = jnp.where(v2, kk, 0)
    g2 = jnp.transpose(tp["conv2_w"], (2, 0, 1))[kkc]          # (wo1, wo1, K, K)
    g2 = jnp.where(v2[:, :, None, None], g2, 0.0)
    w2 = jnp.transpose(g2, (0, 2, 1, 3)).reshape(wo1 * K, wo1 * K)

    # --- fc: remap torch flatten index (c*wo1 + w) -> kernel row (w*K + c). ---
    w3 = jnp.transpose(tp["fc_w"].reshape(code_dim, K, wo1),
                       (0, 2, 1)).reshape(code_dim, wo1 * K)

    return {
        "w1": w1.astype(jnp.bfloat16),
        "b1": jnp.tile(tp["conv1_b"], wo1)[:, None].astype(jnp.float32),
        "w2": w2.astype(jnp.bfloat16),
        "b2": jnp.tile(tp["conv2_b"], wo1)[:, None].astype(jnp.float32),
        "w3": w3.astype(jnp.bfloat16),
        "b3": tp["fc_b"][:, None].astype(jnp.float32),
    }


# --------------------------------- forward -----------------------------------

def dopv2_forward(kp, state, action):
    """DOPV2ModelAeris.forward: predicted_code = motivator(state, action)."""
    B, C, W = state.shape
    A = action.shape[1]
    F0 = C * W + A
    R, F0p = kp["w1"].shape
    code_dim = kp["w3"].shape[0]
    assert F0p >= F0 and kp["w3"].shape[1] == R

    # Batch tile (lane dim): multiple of 128; aim for grid >= 2 once B > 128
    # (keeps DMA/compute pipelining alive and lets v7x shard across its 2 TCs),
    # capped at 512 to amortize the ~0.35 us per-grid-step overhead.
    if B <= 128:
        bb = 128
    else:
        bb = min(512, 128 * (-(-B // 256)))
    Bp = bb * (-(-B // bb))

    # One tiny XLA layout fusion: concat + transpose + bf16 cast + pad.
    # Per-sample bytes streamed into the kernel = 2*(C*W + A) (raw info, bf16);
    # no im2col / stride-block HBM intermediate.
    xt = jnp.concatenate([state.reshape(B, C * W), action], axis=1)   # (B, F0)
    xt = jnp.transpose(xt).astype(jnp.bfloat16)                       # (F0, B)
    xt = jnp.pad(xt, ((0, F0p - F0), (0, Bp - B)))                    # (F0p, Bp)

    wbytes = sum(v.size * v.dtype.itemsize for v in kp.values())
    cost = pl.CostEstimate(
        flops=2 * Bp * (R * F0p + R * R + R * code_dim),
        transcendentals=2 * Bp * R,
        bytes_accessed=Bp * (F0p * 2 + code_dim * 4) + wbytes)

    full = lambda i: (0, 0)
    out = pl.pallas_call(
        _dop_fused_kernel,
        out_shape=jax.ShapeDtypeStruct((code_dim, Bp), jnp.float32),
        grid=(Bp // bb,),
        in_specs=[
            pl.BlockSpec((F0p, bb), lambda i: (0, i)),
            pl.BlockSpec(kp["w1"].shape, full),
            pl.BlockSpec(kp["b1"].shape, full),
            pl.BlockSpec(kp["w2"].shape, full),
            pl.BlockSpec(kp["b2"].shape, full),
            pl.BlockSpec(kp["w3"].shape, full),
            pl.BlockSpec(kp["b3"].shape, full),
        ],
        out_specs=pl.BlockSpec((code_dim, bb), lambda i: (0, i)),
        compiler_params=pltpu.CompilerParams(
            dimension_semantics=("parallel",)),
        cost_estimate=cost,
    )(xt, kp["w1"], kp["b1"], kp["w2"], kp["b2"], kp["w3"], kp["b3"])

    # Lane-dense (code, Bp) kernel output; drop the batch pad, return (B, code).
    return jnp.transpose(out[:, :B])


# ------------------------ pure-JAX reference (check) --------------------------

def _reference_forward(tp, state, action):
    """Direct torch-semantics forward; operands bf16-rounded to mirror the
    kernel's MXU inputs, math in f32/HIGHEST."""
    B, C, W = state.shape
    A = action.shape[1]
    K = tp["conv1_w"].shape[0]
    wo1 = (W + 2 * _P1 - _K1) // _S1 + 1
    hp = jax.lax.Precision.HIGHEST
    bf = lambda a: a.astype(jnp.bfloat16).astype(jnp.float32)

    x = jnp.concatenate(
        [bf(state), jnp.broadcast_to(bf(action)[:, :, None], (B, A, W))], axis=1)
    xp = jnp.pad(x, ((0, 0), (0, 0), (_P1, _P1)))
    w1, w2, w3 = bf(tp["conv1_w"]), bf(tp["conv2_w"]), bf(tp["fc_w"])

    y1 = jnp.stack(
        [jnp.einsum("fct,bct->bf", w1, xp[:, :, o * _S1:o * _S1 + _K1],
                    precision=hp) for o in range(wo1)],
        axis=-1) + tp["conv1_b"][None, :, None]
    y1 = _elu(y1)                                              # (B, K, wo1)
    y1p = jnp.pad(y1, ((0, 0), (0, 0), (_P2, _P2)))
    y2 = jnp.stack(
        [jnp.einsum("fck,bck->bf", w2, y1p[:, :, w:w + _K2], precision=hp)
         for w in range(wo1)],
        axis=-1) + tp["conv2_b"][None, :, None]
    y2 = _elu(y2)
    flat = y2.reshape(B, K * wo1)                              # torch Flatten
    return jnp.dot(flat, w3.T, precision=hp) + tp["fc_b"][None, :]


# ------------------------------------ main ------------------------------------

if __name__ == "__main__":
    B = 2
    STATE_CH = 4
    WIDTH = 16
    ACTION_DIM = 4
    KERNELS = 16
    CODE_DIM = 32
    HEAD_COUNT = 4  # unused by forward(), kept for interface parity

    root = jax.random.PRNGKey(0)
    k_s, k_a, k_p = jax.random.split(root, 3)

    state = jax.random.normal(k_s, (B, STATE_CH, WIDTH), jnp.float32)   # NCW
    action = jax.random.uniform(k_a, (B, ACTION_DIM), jnp.float32, -1.0, 1.0)

    torch_params = init_torch_params(k_p, STATE_CH, ACTION_DIM, KERNELS,
                                     WIDTH, CODE_DIM)
    packed_params = pack_params(torch_params, STATE_CH, WIDTH)

    predicted_code = jax.jit(dopv2_forward)(packed_params, state, action)
    jax.block_until_ready(predicted_code)

    assert predicted_code.shape == (B, CODE_DIM)
    assert predicted_code.dtype == jnp.float32

    ref = _reference_forward(torch_params, state, action)
    # bf16 MXU operands -> allow ~1e-2 absolute slack (bugs show up as O(1)).
    assert jnp.allclose(predicted_code, ref, atol=2e-2, rtol=2e-2), \
        float(jnp.max(jnp.abs(predicted_code - ref)))

    print("KERNEL_OK")
</pallas_src>

<mosaic_0001>
module attributes {stable_mosaic.version = 11 : i64} {
  func.func @_dop_fused_kernel(%arg0: i32, %arg1: memref<72x128xbf16, #tpu.memory_space<vmem>>, %arg2: memref<64x72xbf16, #tpu.memory_space<vmem>>, %arg3: memref<64x1xf32, #tpu.memory_space<vmem>>, %arg4: memref<64x64xbf16, #tpu.memory_space<vmem>>, %arg5: memref<64x1xf32, #tpu.memory_space<vmem>>, %arg6: memref<32x64xbf16, #tpu.memory_space<vmem>>, %arg7: memref<32x1xf32, #tpu.memory_space<vmem>>, %arg8: memref<32x128xf32, #tpu.memory_space<vmem>>) attributes {dimension_semantics = [#tpu.dimension_semantics<parallel>], iteration_bounds = array<i64: 1>, scalar_prefetch = 0 : i64, scratch_operands = 0 : i64, tpu.core_type = #tpu.core_type<tc>, window_params = [{transform_indices = @transform_0, window_bounds = array<i64: 72, 128>}, {pipeline_mode = #tpu.pipeline_mode<synchronous>, transform_indices = @transform_1, window_bounds = array<i64: 64, 72>}, {pipeline_mode = #tpu.pipeline_mode<synchronous>, transform_indices = @transform_2, window_bounds = array<i64: 64, 1>}, {pipeline_mode = #tpu.pipeline_mode<synchronous>, transform_indices = @transform_3, window_bounds = array<i64: 64, 64>}, {pipeline_mode = #tpu.pipeline_mode<synchronous>, transform_indices = @transform_4, window_bounds = array<i64: 64, 1>}, {pipeline_mode = #tpu.pipeline_mode<synchronous>, transform_indices = @transform_5, window_bounds = array<i64: 32, 64>}, {pipeline_mode = #tpu.pipeline_mode<synchronous>, transform_indices = @transform_6, window_bounds = array<i64: 32, 1>}, {transform_indices = @transform_7, window_bounds = array<i64: 32, 128>}]} {
    %c0 = arith.constant 0 : index
    %c0_0 = arith.constant 0 : index
    %0 = vector.load %arg2[%c0, %c0_0] : memref<64x72xbf16, #tpu.memory_space<vmem>>, vector<64x72xbf16>
    %c0_1 = arith.constant 0 : index
    %c0_2 = arith.constant 0 : index
    %1 = vector.load %arg1[%c0_1, %c0_2] : memref<72x128xbf16, #tpu.memory_space<vmem>>, vector<72x128xbf16>
    %cst = arith.constant dense<0.000000e+00> : vector<64x128xf32>
    %2 = tpu.matmul %0, %1, %cst {dimension_numbers = #tpu.dot_dimension_numbers<[1], [0], [0], [1], [0, 0, 1, 1], [], []>} : vector<64x72xbf16>, vector<72x128xbf16>, vector<64x128xf32> -> vector<64x128xf32>
    %c0_3 = arith.constant 0 : index
    %c0_4 = arith.constant 0 : index
    %3 = vector.load %arg3[%c0_3, %c0_4] : memref<64x1xf32, #tpu.memory_space<vmem>>, vector<64x1xf32>
    %4 = vector.broadcast %3 : vector<64x1xf32> to vector<64x128xf32>
    %5 = arith.addf %2, %4 : vector<64x128xf32>
    %cst_5 = arith.constant 0.000000e+00 : f32
    %6 = vector.broadcast %cst_5 : f32 to vector<64x128xf32>
    %7 = arith.cmpf ogt, %5, %6 : vector<64x128xf32>
    %8 = math.exp %5 : vector<64x128xf32>
    %cst_6 = arith.constant 1.000000e+00 : f32
    %9 = vector.broadcast %cst_6 : f32 to vector<64x128xf32>
    %10 = arith.subf %8, %9 : vector<64x128xf32>
    %11 = arith.select %7, %5, %10 : vector<64x128xi1>, vector<64x128xf32>
    %12 = arith.truncf %11 : vector<64x128xf32> to vector<64x128xbf16>
    %c0_7 = arith.constant 0 : index
    %c0_8 = arith.constant 0 : index
    %13 = vector.load %arg4[%c0_7, %c0_8] : memref<64x64xbf16, #tpu.memory_space<vmem>>, vector<64x64xbf16>
    %cst_9 = arith.constant dense<0.000000e+00> : vector<64x128xf32>
    %14 = tpu.matmul %13, %12, %cst_9 {dimension_numbers = #tpu.dot_dimension_numbers<[1], [0], [0], [1], [0, 0, 1, 1], [], []>} : vector<64x64xbf16>, vector<64x128xbf16>, vector<64x128xf32> -> vector<64x128xf32>
    %c0_10 = arith.constant 0 : index
    %c0_11 = arith.constant 0 : index
    %15 = vector.load %arg5[%c0_10, %c0_11] : memref<64x1xf32, #tpu.memory_space<vmem>>, vector<64x1xf32>
    %16 = vector.broadcast %15 : vector<64x1xf32> to vector<64x128xf32>
    %17 = arith.addf %14, %16 : vector<64x128xf32>
    %cst_12 = arith.constant 0.000000e+00 : f32
    %18 = vector.broadcast %cst_12 : f32 to vector<64x128xf32>
    %19 = arith.cmpf ogt, %17, %18 : vector<64x128xf32>
    %20 = math.exp %17 : vector<64x128xf32>
    %cst_13 = arith.constant 1.000000e+00 : f32
    %21 = vector.broadcast %cst_13 : f32 to vector<64x128xf32>
    %22 = arith.subf %20, %21 : vector<64x128xf32>
    %23 = arith.select %19, %17, %22 : vector<64x128xi1>, vector<64x128xf32>
    %24 = arith.truncf %23 : vector<64x128xf32> to vector<64x128xbf16>
    %c0_14 = arith.constant 0 : index
    %c0_15 = arith.constant 0 : index
    %25 = vector.load %arg6[%c0_14, %c0_15] : memref<32x64xbf16, #tpu.memory_space<vmem>>, vector<32x64xbf16>
    %cst_16 = arith.constant dense<0.000000e+00> : vector<32x128xf32>
    %26 = tpu.matmul %25, %24, %cst_16 {dimension_numbers = #tpu.dot_dimension_numbers<[1], [0], [0], [1], [0, 0, 1, 1], [], []>} : vector<32x64xbf16>, vector<64x128xbf16>, vector<32x128xf32> -> vector<32x128xf32>
    %c0_17 = arith.constant 0 : index
    %c0_18 = arith.constant 0 : index
    %27 = vector.load %arg7[%c0_17, %c0_18] : memref<32x1xf32, #tpu.memory_space<vmem>>, vector<32x1xf32>
    %28 = vector.broadcast %27 : vector<32x1xf32> to vector<32x128xf32>
    %29 = arith.addf %26, %28 : vector<32x128xf32>
    %c0_19 = arith.constant 0 : index
    %c0_20 = arith.constant 0 : index
    %30 = vector.load %arg8[%c0_19, %c0_20] : memref<32x128xf32, #tpu.memory_space<vmem>>, vector<32x128xf32>
    tpu.vector_store %arg8[%c0_19, %c0_20], %29 {strides = array<i32>} : memref<32x128xf32, #tpu.memory_space<vmem>>, vector<32x128xf32>,
    return
  }
  func.func @transform_0(%arg0: i32) -> (i32, i32) {
    %c0_i32 = arith.constant 0 : i32
    %c0_i32_0 = arith.constant 0 : i32
    return %c0_i32, %arg0 : i32, i32
  }
  func.func @transform_1(%arg0: i32) -> (i32, i32) {
    %c0_i32 = arith.constant 0 : i32
    %c0_i32_0 = arith.constant 0 : i32
    %c0_i32_1 = arith.constant 0 : i32
    return %c0_i32, %c0_i32_0 : i32, i32
  }
  func.func @transform_2(%arg0: i32) -> (i32, i32) {
    %c0_i32 = arith.constant 0 : i32
    %c0_i32_0 = arith.constant 0 : i32
    %c0_i32_1 = arith.constant 0 : i32
    return %c0_i32, %c0_i32_0 : i32, i32
  }
  func.func @transform_3(%arg0: i32) -> (i32, i32) {
    %c0_i32 = arith.constant 0 : i32
    %c0_i32_0 = arith.constant 0 : i32
    %c0_i32_1 = arith.constant 0 : i32
    return %c0_i32, %c0_i32_0 : i32, i32
  }
  func.func @transform_4(%arg0: i32) -> (i32, i32) {
    %c0_i32 = arith.constant 0 : i32
    %c0_i32_0 = arith.constant 0 : i32
    %c0_i32_1 = arith.constant 0 : i32
    return %c0_i32, %c0_i32_0 : i32, i32
  }
  func.func @transform_5(%arg0: i32) -> (i32, i32) {
    %c0_i32 = arith.constant 0 : i32
    %c0_i32_0 = arith.constant 0 : i32
    %c0_i32_1 = arith.constant 0 : i32
    return %c0_i32, %c0_i32_0 : i32, i32
  }
  func.func @transform_6(%arg0: i32) -> (i32, i32) {
    %c0_i32 = arith.constant 0 : i32
    %c0_i32_0 = arith.constant 0 : i32
    %c0_i32_1 = arith.constant 0 : i32
    return %c0_i32, %c0_i32_0 : i32, i32
  }
  func.func @transform_7(%arg0: i32) -> (i32, i32) {
    %c0_i32 = arith.constant 0 : i32
    %c0_i32_0 = arith.constant 0 : i32
    return %c0_i32, %arg0 : i32, i32
  }
}

</mosaic_0001>

<llo_original>
// kernel: dopv2_forward.1
$region0: #{dopv2_forward.1}
  #allocation0 [shape = 'u32[]', space=smem, size = 0x4, offset = 0x4, fixed_abs, tag = 'smem constant byte address 0x4 - core index']
  #allocation1 [shape = 'u32[72,128]{1,0:T(1,128)}', space=vmem, size = 0x9000, scoped, tag = 'internal scratch']
  %s0 = inlined_call_operand.vmem [shape: bf16[72,128], index: 0, kind: input, shape index: {}]
  %s1 = inlined_call_operand.vmem [shape: bf16[64,72], index: 1, kind: input, shape index: {}]
  %s2 = inlined_call_operand.vmem [shape: f32[64,1], index: 2, kind: input, shape index: {}]
  %s3 = inlined_call_operand.vmem [shape: bf16[64,64], index: 3, kind: input, shape index: {}]
  %s4 = inlined_call_operand.vmem [shape: f32[64,1], index: 4, kind: input, shape index: {}]
  %s5 = inlined_call_operand.vmem [shape: bf16[32,64], index: 5, kind: input, shape index: {}]
  %s6 = inlined_call_operand.vmem [shape: f32[32,1], index: 6, kind: input, shape index: {}]
  %s7 = inlined_call_operand.vmem [shape: f32[32,128], index: 7, kind: output, shape index: {}]
  %s8 = sld [smem:[#allocation0]]
  $region38: #{dopv2_forward.1} parent=0
    _
  %s10 = ssub.s32 1, %s8
  %s11 = scalar_select 0, %s10, %s8
  // Predicated region
  $region2: #{dopv2_forward.1} parent=0 // pred_check
    _
  $region3: #{dopv2_forward.1} parent=0 // pred_check_branch
    %13 = sbr.rel (0) target = $region5
  $region4: #{dopv2_forward.1} parent=0 // pred_region
    _
  $region5: #{dopv2_forward.1} parent=0 // pred_fallthru
    _
  // Predicated region
  $region6: #{dopv2_forward.1} parent=0 // pred_check
    _
  $region7: #{dopv2_forward.1} parent=0 // pred_check_branch
    %15 = sbr.rel (0) target = $region9
  $region8: #{dopv2_forward.1} parent=0 // pred_region
    _
  $region9: #{dopv2_forward.1} parent=0 // pred_fallthru
    _
  // Predicated region
  $region10: #{dopv2_forward.1} parent=0 // pred_check
    _
  $region11: #{dopv2_forward.1} parent=0 // pred_check_branch
    %17 = sbr.rel (0) target = $region13
  $region12: #{dopv2_forward.1} parent=0 // pred_region
    _
  $region13: #{dopv2_forward.1} parent=0 // pred_fallthru
    _
  // Predicated region
  $region14: #{dopv2_forward.1} parent=0 // pred_check
    _
  $region15: #{dopv2_forward.1} parent=0 // pred_check_branch
    %19 = sbr.rel (0) target = $region17
  $region16: #{dopv2_forward.1} parent=0 // pred_region
    _
  $region17: #{dopv2_forward.1} parent=0 // pred_fallthru
    _
  // Predicated region
  $region18: #{dopv2_forward.1} parent=0 // pred_check
    _
  $region19: #{dopv2_forward.1} parent=0 // pred_check_branch
    %21 = sbr.rel (0) target = $region21
  $region20: #{dopv2_forward.1} parent=0 // pred_region
    _
  $region21: #{dopv2_forward.1} parent=0 // pred_fallthru
    _
  // Predicated region
  $region22: #{dopv2_forward.1} parent=0 // pred_check
    _
  $region23: #{dopv2_forward.1} parent=0 // pred_check_branch
    %23 = sbr.rel (0) target = $region25
  $region24: #{dopv2_forward.1} parent=0 // pred_region
    _
  $region25: #{dopv2_forward.1} parent=0 // pred_fallthru
    _
  // Predicated region
  $region26: #{dopv2_forward.1} parent=0 // pred_check
    _
  $region27: #{dopv2_forward.1} parent=0 // pred_check_branch
    %25 = sbr.rel (0) target = $region29
  $region28: #{dopv2_forward.1} parent=0 // pred_region
    _
  $region29: #{dopv2_forward.1} parent=0 // pred_fallthru
    _
  %v27 = vld [vmem:[%s1] sm:$0xf]
  %v28 = vld [vmem:[%s1 + $0x4] sm:$0xf]
  %v29 = vld [vmem:[%s1 + $0x8] sm:$0xf]
  %v30 = vld [vmem:[%s1 + $0xc] sm:$0xf]
  %v31 = vld [vmem:[%s1 + $0x10] sm:$0xf]
  %v32 = vld [vmem:[%s1 + $0x14] sm:$0xf]
  %v33 = vld [vmem:[%s1 + $0x18] sm:$0xf]
  %v34 = vld [vmem:[%s1 + $0x1c] sm:$0xf]
  %v35 = vld [vmem:[%s0] sm:$0xf]
  %v36 = vld [vmem:[%s0 + $0x4] sm:$0xf]
  %v37 = vld [vmem:[%s0 + $0x8] sm:$0xf]
  %v38 = vld [vmem:[%s0 + $0xc] sm:$0xf]
  %v39 = vld [vmem:[%s0 + $0x10] sm:$0xf]
  %v40 = vld [vmem:[%s0 + $0x14] sm:$0xf]
  %v41 = vld [vmem:[%s0 + $0x18] sm:$0xf]
  %v42 = vld [vmem:[%s0 + $0x1c] sm:$0xf]
  %v43 = vld [vmem:[%s0 + $0x20] sm:$0xf]
  %v44 = vld [vmem:[%s2] sm:$0xff]
  %v45 = vld [vmem:[%s2 + $0x8] sm:$0xff]
  %v46 = vld [vmem:[%s2 + $0x10] sm:$0xff]
  %v47 = vld [vmem:[%s2 + $0x18] sm:$0xff]
  %v48 = vld [vmem:[%s2 + $0x20] sm:$0xff]
  %v49 = vld [vmem:[%s2 + $0x28] sm:$0xff]
  %v50 = vld [vmem:[%s2 + $0x30] sm:$0xff]
  %v51 = vld [vmem:[%s2 + $0x38] sm:$0xff]
  %53 = vset.pattern.permute.xlu0 0
  %54 = vperm.xlu0 %53, %v44
  %v55 = vpop.permute.xlu0 %54
  %58 = vset.pattern.permute.xlu0 0
  %59 = vperm.xlu0 %58, %v45
  %v60 = vpop.permute.xlu0 %59
  %63 = vset.pattern.permute.xlu0 0
  %64 = vperm.xlu0 %63, %v46
  %v65 = vpop.permute.xlu0 %64
  %68 = vset.pattern.permute.xlu0 0
  %69 = vperm.xlu0 %68, %v47
  %v70 = vpop.permute.xlu0 %69
  %73 = vset.pattern.permute.xlu0 0
  %74 = vperm.xlu0 %73, %v48
  %v75 = vpop.permute.xlu0 %74
  %78 = vset.pattern.permute.xlu0 0
  %79 = vperm.xlu0 %78, %v49
  %v80 = vpop.permute.xlu0 %79
  %83 = vset.pattern.permute.xlu0 0
  %84 = vperm.xlu0 %83, %v50
  %v85 = vpop.permute.xlu0 %84
  %88 = vset.pattern.permute.xlu0 0
  %89 = vperm.xlu0 %88, %v51
  %v90 = vpop.permute.xlu0 %89
  %v100 = vunpack.c.l.b16 %v27
  %v101 = vunpack.c.l.b16 %v28
  %v102 = vunpack.c.l.b16 %v29
  %v103 = vunpack.c.l.b16 %v30
  %v104 = vunpack.c.l.b16 %v31
  %v105 = vunpack.c.l.b16 %v32
  %v106 = vunpack.c.l.b16 %v33
  %v107 = vunpack.c.l.b16 %v34
  %v108 = vpack.c.b16 %v101, %v100
  %v109 = vpack.c.b16 %v103, %v102
  %v110 = vpack.c.b16 %v105, %v104
  %v111 = vpack.c.b16 %v107, %v106
  %v121 = vunpack.c.l.b16 %v35
  %v122 = vunpack.c.l.b16 %v36
  %v123 = vunpack.c.l.b16 %v37
  %v124 = vunpack.c.l.b16 %v38
  %v125 = vunpack.c.l.b16 %v39
  %v126 = vunpack.c.l.b16 %v40
  %v127 = vunpack.c.l.b16 %v41
  %v128 = vunpack.c.l.b16 %v42
  %v129 = vunpack.c.l.b16 %v43
  %v130 = vpack.c.b16 %v122, %v121
  %v131 = vpack.c.b16 %v124, %v123
  %v132 = vpack.c.b16 %v126, %v125
  %v133 = vpack.c.b16 %v128, %v127
  %v134 = vpack.c.b16 %v129, %v129
  %vm139 = vcmask 588800
  %v141 = vsel %vm139, %v108, 0
  %v144 = vsel %vm139, %v109, 0
  %v147 = vsel %vm139, %v110, 0
  %v150 = vsel %vm139, %v111, 0
  %vm152 = vcmask 1043456
  %v154 = vsel %vm152, %v134, 0
  %156 = vmatpush.bf16.msra.mxu0 0
  %157 = vmatpush.bf16.msra.mxu0 0
  %158 = vmatpush.bf16.msra.mxu0 0
  %159 = vmatpush.bf16.msra.mxu0 %v154
  %160 = vmatpush.bf16.msra.mxu0 %v133
  %161 = vmatpush.bf16.msra.mxu0 %v132
  %162 = vmatpush.bf16.msra.mxu0 %v131
  %163 = vmatpush.bf16.msra.mxu0 %v130
  %164 = vmatmul.bf16.gmra.mxu0 %v141
  %v165 = vpop.f32.mrf.mxu0
  %v166 = vadd.f32 %v55, %v165
  %v167 = vpop.f32.mrf.mxu0
  %v168 = vadd.f32 %v60, %v167
  %169 = vmatmul.bf16.gmra.mxu0 %v144
  %v170 = vpop.f32.mrf.mxu0
  %v171 = vadd.f32 %v65, %v170
  %v172 = vpop.f32.mrf.mxu0
  %v173 = vadd.f32 %v70, %v172
  %174 = vmatmul.bf16.gmra.mxu0 %v147
  %v175 = vpop.f32.mrf.mxu0
  %v176 = vadd.f32 %v75, %v175
  %v177 = vpop.f32.mrf.mxu0
  %v178 = vadd.f32 %v80, %v177
  %179 = vmatmul.bf16.gmra.mxu0 %v150
  %v180 = vpop.f32.mrf.mxu0
  %v181 = vadd.f32 %v85, %v180
  %v182 = vpop.f32.mrf.mxu0
  %v183 = vadd.f32 %v90, %v182
  %184 = vdwg.mxu0
  %vm185 = vcmp.gt.f32.partialorder %v166, 0.0
  %vm186 = vcmp.gt.f32.partialorder %v168, 0.0
  %vm187 = vcmp.gt.f32.partialorder %v171, 0.0
  %vm188 = vcmp.gt.f32.partialorder %v173, 0.0
  %vm189 = vcmp.gt.f32.partialorder %v176, 0.0
  %vm190 = vcmp.gt.f32.partialorder %v178, 0.0
  %vm191 = vcmp.gt.f32.partialorder %v181, 0.0
  %vm192 = vcmp.gt.f32.partialorder %v183, 0.0
  %v193 = vmul.f32 %v166, 1.442695
  %v194 = vpow.pop %v193
  %v195 = vmul.f32 %v168, 1.442695
  %v196 = vpow.pop %v195
  %v197 = vmul.f32 %v171, 1.442695
  %v198 = vpow.pop %v197
  %v199 = vmul.f32 %v173, 1.442695
  %v200 = vpow.pop %v199
  %v201 = vmul.f32 %v176, 1.442695
  %v202 = vpow.pop %v201
  %v203 = vmul.f32 %v178, 1.442695
  %v204 = vpow.pop %v203
  %v205 = vmul.f32 %v181, 1.442695
  %v206 = vpow.pop %v205
  %v207 = vmul.f32 %v183, 1.442695
  %v208 = vpow.pop %v207
  %v209 = vsub.f32 %v194, 1.0
  %v210 = vsub.f32 %v196, 1.0
  %v211 = vsub.f32 %v198, 1.0
  %v212 = vsub.f32 %v200, 1.0
  %v213 = vsub.f32 %v202, 1.0
  %v214 = vsub.f32 %v204, 1.0
  %v215 = vsub.f32 %v206, 1.0
  %v216 = vsub.f32 %v208, 1.0
  %v217 = vsel %vm185, %v166, %v209
  %v218 = vsel %vm186, %v168, %v210
  %v219 = vsel %vm187, %v171, %v211
  %v220 = vsel %vm188, %v173, %v212
  %v221 = vsel %vm189, %v176, %v213
  %v222 = vsel %vm190, %v178, %v214
  %v223 = vsel %vm191, %v181, %v215
  %v224 = vsel %vm192, %v183, %v216
  %v225 = vpack.c.bf16 %v218, %v217
  %v226 = vpack.c.bf16 %v220, %v219
  %v227 = vpack.c.bf16 %v222, %v221
  %v228 = vpack.c.bf16 %v224, %v223
  %v229 = vld [vmem:[%s3] sm:$0xf]
  %v230 = vld [vmem:[%s3 + $0x4] sm:$0xf]
  %v231 = vld [vmem:[%s3 + $0x8] sm:$0xf]
  %v232 = vld [vmem:[%s3 + $0xc] sm:$0xf]
  %v233 = vld [vmem:[%s3 + $0x10] sm:$0xf]
  %v234 = vld [vmem:[%s3 + $0x14] sm:$0xf]
  %v235 = vld [vmem:[%s3 + $0x18] sm:$0xf]
  %v236 = vld [vmem:[%s3 + $0x1c] sm:$0xf]
  %v237 = vld [vmem:[%s4] sm:$0xff]
  %v238 = vld [vmem:[%s4 + $0x8] sm:$0xff]
  %v239 = vld [vmem:[%s4 + $0x10] sm:$0xff]
  %v240 = vld [vmem:[%s4 + $0x18] sm:$0xff]
  %v241 = vld [vmem:[%s4 + $0x20] sm:$0xff]
  %v242 = vld [vmem:[%s4 + $0x28] sm:$0xff]
  %v243 = vld [vmem:[%s4 + $0x30] sm:$0xff]
  %v244 = vld [vmem:[%s4 + $0x38] sm:$0xff]
  %246 = vset.pattern.permute.xlu0 0
  %247 = vperm.xlu0 %246, %v237
  %v248 = vpop.permute.xlu0 %247
  %251 = vset.pattern.permute.xlu0 0
  %252 = vperm.xlu0 %251, %v238
  %v253 = vpop.permute.xlu0 %252
  %256 = vset.pattern.permute.xlu0 0
  %257 = vperm.xlu0 %256, %v239
  %v258 = vpop.permute.xlu0 %257
  %261 = vset.pattern.permute.xlu0 0
  %262 = vperm.xlu0 %261, %v240
  %v263 = vpop.permute.xlu0 %262
  %266 = vset.pattern.permute.xlu0 0
  %267 = vperm.xlu0 %266, %v241
  %v268 = vpop.permute.xlu0 %267
  %271 = vset.pattern.permute.xlu0 0
  %272 = vperm.xlu0 %271, %v242
  %v273 = vpop.permute.xlu0 %272
  %276 = vset.pattern.permute.xlu0 0
  %277 = vperm.xlu0 %276, %v243
  %v278 = vpop.permute.xlu0 %277
  %281 = vset.pattern.permute.xlu0 0
  %282 = vperm.xlu0 %281, %v244
  %v283 = vpop.permute.xlu0 %282
  %v293 = vunpack.c.l.b16 %v229
  %v294 = vunpack.c.l.b16 %v230
  %v295 = vunpack.c.l.b16 %v231
  %v296 = vunpack.c.l.b16 %v232
  %v297 = vunpack.c.l.b16 %v233
  %v298 = vunpack.c.l.b16 %v234
  %v299 = vunpack.c.l.b16 %v235
  %v300 = vunpack.c.l.b16 %v236
  %v301 = vpack.c.b16 %v294, %v293
  %v302 = vpack.c.b16 %v296, %v295
  %v303 = vpack.c.b16 %v298, %v297
  %v304 = vpack.c.b16 %v300, %v299
  %vm305 = vcmask 523264
  %v307 = vsel %vm305, %v301, 0
  %v310 = vsel %vm305, %v302, 0
  %v313 = vsel %vm305, %v303, 0
  %v316 = vsel %vm305, %v304, 0
  %318 = vmatpush.bf16.msra.mxu0 0
  %319 = vmatpush.bf16.msra.mxu0 0
  %320 = vmatpush.bf16.msra.mxu0 0
  %321 = vmatpush.bf16.msra.mxu0 0
  %322 = vmatpush.bf16.msra.mxu0 %v228
  %323 = vmatpush.bf16.msra.mxu0 %v227
  %324 = vmatpush.bf16.msra.mxu0 %v226
  %325 = vmatpush.bf16.msra.mxu0 %v225
  %326 = vmatmul.bf16.gmra.mxu0 %v307
  %v327 = vpop.f32.mrf.mxu0
  %v328 = vadd.f32 %v248, %v327
  %v329 = vpop.f32.mrf.mxu0
  %v330 = vadd.f32 %v253, %v329
  %331 = vmatmul.bf16.gmra.mxu0 %v310
  %v332 = vpop.f32.mrf.mxu0
  %v333 = vadd.f32 %v258, %v332
  %v334 = vpop.f32.mrf.mxu0
  %v335 = vadd.f32 %v263, %v334
  %336 = vmatmul.bf16.gmra.mxu0 %v313
  %v337 = vpop.f32.mrf.mxu0
  %v338 = vadd.f32 %v268, %v337
  %v339 = vpop.f32.mrf.mxu0
  %v340 = vadd.f32 %v273, %v339
  %341 = vmatmul.bf16.gmra.mxu0 %v316
  %v342 = vpop.f32.mrf.mxu0
  %v343 = vadd.f32 %v278, %v342
  %v344 = vpop.f32.mrf.mxu0
  %v345 = vadd.f32 %v283, %v344
  %346 = vdwg.mxu0
  %vm347 = vcmp.gt.f32.partialorder %v328, 0.0
  %vm348 = vcmp.gt.f32.partialorder %v330, 0.0
  %vm349 = vcmp.gt.f32.partialorder %v333, 0.0
  %vm350 = vcmp.gt.f32.partialorder %v335, 0.0
  %vm351 = vcmp.gt.f32.partialorder %v338, 0.0
  %vm352 = vcmp.gt.f32.partialorder %v340, 0.0
  %vm353 = vcmp.gt.f32.partialorder %v343, 0.0
  %vm354 = vcmp.gt.f32.partialorder %v345, 0.0
  %v355 = vmul.f32 %v328, 1.442695
  %v356 = vpow.pop %v355
  %v357 = vmul.f32 %v330, 1.442695
  %v358 = vpow.pop %v357
  %v359 = vmul.f32 %v333, 1.442695
  %v360 = vpow.pop %v359
  %v361 = vmul.f32 %v335, 1.442695
  %v362 = vpow.pop %v361
  %v363 = vmul.f32 %v338, 1.442695
  %v364 = vpow.pop %v363
  %v365 = vmul.f32 %v340, 1.442695
  %v366 = vpow.pop %v365
  %v367 = vmul.f32 %v343, 1.442695
  %v368 = vpow.pop %v367
  %v369 = vmul.f32 %v345, 1.442695
  %v370 = vpow.pop %v369
  %v371 = vsub.f32 %v356, 1.0
  %v372 = vsub.f32 %v358, 1.0
  %v373 = vsub.f32 %v360, 1.0
  %v374 = vsub.f32 %v362, 1.0
  %v375 = vsub.f32 %v364, 1.0
  %v376 = vsub.f32 %v366, 1.0
  %v377 = vsub.f32 %v368, 1.0
  %v378 = vsub.f32 %v370, 1.0
  %v379 = vsel %vm347, %v328, %v371
  %v380 = vsel %vm348, %v330, %v372
  %v381 = vsel %vm349, %v333, %v373
  %v382 = vsel %vm350, %v335, %v374
  %v383 = vsel %vm351, %v338, %v375
  %v384 = vsel %vm352, %v340, %v376
  %v385 = vsel %vm353, %v343, %v377
  %v386 = vsel %vm354, %v345, %v378
  %v387 = vpack.c.bf16 %v380, %v379
  %v388 = vpack.c.bf16 %v382, %v381
  %v389 = vpack.c.bf16 %v384, %v383
  %v390 = vpack.c.bf16 %v386, %v385
  %v391 = vld [vmem:[%s5] sm:$0xf]
  %v392 = vld [vmem:[%s5 + $0x4] sm:$0xf]
  %v393 = vld [vmem:[%s5 + $0x8] sm:$0xf]
  %v394 = vld [vmem:[%s5 + $0xc] sm:$0xf]
  %v395 = vld [vmem:[%s6] sm:$0xff]
  %v396 = vld [vmem:[%s6 + $0x8] sm:$0xff]
  %v397 = vld [vmem:[%s6 + $0x10] sm:$0xff]
  %v398 = vld [vmem:[%s6 + $0x18] sm:$0xff]
  %400 = vset.pattern.permute.xlu0 0
  %401 = vperm.xlu0 %400, %v395
  %v402 = vpop.permute.xlu0 %401
  %405 = vset.pattern.permute.xlu0 0
  %406 = vperm.xlu0 %405, %v396
  %v407 = vpop.permute.xlu0 %406
  %410 = vset.pattern.permute.xlu0 0
  %411 = vperm.xlu0 %410, %v397
  %v412 = vpop.permute.xlu0 %411
  %415 = vset.pattern.permute.xlu0 0
  %416 = vperm.xlu0 %415, %v398
  %v417 = vpop.permute.xlu0 %416
  %v423 = vunpack.c.l.b16 %v391
  %v424 = vunpack.c.l.b16 %v392
  %v425 = vunpack.c.l.b16 %v393
  %v426 = vunpack.c.l.b16 %v394
  %v427 = vpack.c.b16 %v424, %v423
  %v428 = vpack.c.b16 %v426, %v425
  %v430 = vsel %vm305, %v427, 0
  %v433 = vsel %vm305, %v428, 0
  %435 = vmatpush.bf16.msra.mxu0 0
  %436 = vmatpush.bf16.msra.mxu0 0
  %437 = vmatpush.bf16.msra.mxu0 0
  %438 = vmatpush.bf16.msra.mxu0 0
  %439 = vmatpush.bf16.msra.mxu0 %v390
  %440 = vmatpush.bf16.msra.mxu0 %v389
  %441 = vmatpush.bf16.msra.mxu0 %v388
  %442 = vmatpush.bf16.msra.mxu0 %v387
  %443 = vmatmul.bf16.gmra.mxu0 %v430
  %v444 = vpop.f32.mrf.mxu0
  %v445 = vadd.f32 %v402, %v444
  %v446 = vpop.f32.mrf.mxu0
  %v447 = vadd.f32 %v407, %v446
  %448 = vmatmul.bf16.gmra.mxu0 %v433
  %v449 = vpop.f32.mrf.mxu0
  %v450 = vadd.f32 %v412, %v449
  %v451 = vpop.f32.mrf.mxu0
  %v452 = vadd.f32 %v417, %v451
  %453 = vdwg.mxu0
  %454 = vst [vmem:[%s7] sm:$0xff] %v445
  %455 = vst [vmem:[%s7 + $0x8] sm:$0xff] %v447
  %456 = vst [vmem:[%s7 + $0x10] sm:$0xff] %v450
  %457 = vst [vmem:[%s7 + $0x18] sm:$0xff] %v452
  // Predicated region
  $region30: #{dopv2_forward.1} parent=0 // pred_check
    _
  $region31: #{dopv2_forward.1} parent=0 // pred_check_branch
    %459 = sbr.rel (0) target = $region33
  $region32: #{dopv2_forward.1} parent=0 // pred_region
    _
  $region33: #{dopv2_forward.1} parent=0 // pred_fallthru
    _
  // Predicated region
  $region34: #{dopv2_forward.1} parent=0 // pred_check
    _
  $region35: #{dopv2_forward.1} parent=0 // pred_check_branch
    %461 = sbr.rel (0) target = $region37
  $region36: #{dopv2_forward.1} parent=0 // pred_region
    _
  $region37: #{dopv2_forward.1} parent=0 // pred_fallthru
    _

</llo_original>
